<compile_context>
chip_gen: v7x
topology: tpu7x:2x2x1
jax: 0.10.0
libtpu: 0.0.40
codegen_flags: <defaults>
</compile_context>

<pallas_src>
from functools import partial

import jax
import jax.numpy as jnp
from jax.experimental import pallas as pl
from jax.experimental.pallas import tpu as pltpu


# ---------------------------------------------------------------------------
# Small helpers.
# ---------------------------------------------------------------------------
def _round_up(n, m):
    return (n + m - 1) // m * m


def _pad2d(a, rows, cols, dtype):
    """Cast + pad a 2-D array; no-op (beyond the cast) if already aligned."""
    a = a.astype(dtype)
    pr, pc = rows - a.shape[0], cols - a.shape[1]
    if pr or pc:
        a = jnp.pad(a, ((0, pr), (0, pc)))
    return a


def _choose_batch_tile(b):
    """Batch tile / padded batch.

    * >=512 rows: 256-row tiles (full-width v6e/v7x MXU, >=2 tiles).
    * >=256 rows: 128-row tiles (guarantees >=2 tiles so both v7x TCs work).
    * smaller:    one tile of round_up(b, 8) rows.
    Non-tile-multiple batches are padded up (never one giant untiled block).
    """
    bp8 = _round_up(b, 8)
    if bp8 >= 512:
        tb = 256
    elif bp8 >= 256:
        tb = 128
    else:
        tb = bp8
    return tb, _round_up(bp8, tb)


def _choose_time_chunk(T, tb, hp, max_chunk=8, vmem_budget_bytes=4 << 20):
    """Largest divisor of T <= max_chunk keeping the streamed per-chunk
    gx/out VMEM (double-buffered, f32) under the budget."""
    per_step = tb * (3 * hp + hp) * 4 * 2
    cap = int(max(1, min(max_chunk, vmem_budget_bytes // max(per_step, 1))))
    tc = 1
    for d in range(1, min(T, cap) + 1):
        if T % d == 0:
            tc = d
    return tc


def _sigmoid_fast(x):
    # Clamp so exp(-x) never overflows to inf (vrcp(inf) is not guaranteed 0).
    x = jnp.maximum(x, -60.0)
    return pl.reciprocal(1.0 + jnp.exp(-x), approx=True)


# ---------------------------------------------------------------------------
# Single-step GRU cell (matches the PyTorch module forward exactly).
# ---------------------------------------------------------------------------
def pack_gru_cell_params(wx, wh, bx, bh, *, matmul_dtype=None):
    """Pack PyTorch-layout params once (outside the hot path).

    wx: (3H, I), wh: (3H, H), bx/bh: (3H,)  ->
      w_all: (hp + Ip, 4*hp)  rows = [h | x], columns = [r | z | i_n | h_n]
      b_all: (1, 4*hp)        r/z biases pre-summed, n biases kept split.
    hp = round_up(H, 128), Ip = round_up(I, 128)  (lane-dense MXU feed).
    """
    three_h, I = wx.shape
    H = three_h // 3
    hp = _round_up(H, 128)
    ip = _round_up(I, 128)
    mm = matmul_dtype or wx.dtype

    w_all = jnp.zeros((hp + ip, 4 * hp), jnp.float32)
    for g, col in ((0, 0), (1, 1)):                       # r, z: h rows + x rows
        w_all = w_all.at[0:H, col * hp:col * hp + H].set(wh[g * H:(g + 1) * H].T)
        w_all = w_all.at[hp:hp + I, col * hp:col * hp + H].set(wx[g * H:(g + 1) * H].T)
    w_all = w_all.at[hp:hp + I, 2 * hp:2 * hp + H].set(wx[2 * H:3 * H].T)  # i_n
    w_all = w_all.at[0:H, 3 * hp:3 * hp + H].set(wh[2 * H:3 * H].T)        # h_n

    b_all = jnp.zeros((1, 4 * hp), jnp.float32)
    b_all = b_all.at[0, 0:H].set(bx[0:H] + bh[0:H])
    b_all = b_all.at[0, hp:hp + H].set(bx[H:2 * H] + bh[H:2 * H])
    b_all = b_all.at[0, 2 * hp:2 * hp + H].set(bx[2 * H:3 * H])
    b_all = b_all.at[0, 3 * hp:3 * hp + H].set(bh[2 * H:3 * H])
    return w_all.astype(mm), b_all, hp, ip


def gru_cell_kernel(xh_ref, w_ref, b_ref, out_ref, *, approx):
    hp = out_ref.shape[-1]
    sig = _sigmoid_fast if approx else jax.nn.sigmoid

    # Single fused matmul; r/z sums and their biases come straight off the MXU.
    g = jnp.dot(xh_ref[...], w_ref[...],
                preferred_element_type=jnp.float32) + b_ref[...]

    # All slices are hp-multiples -> 128-lane aligned (no shuffles).
    r = sig(g[:, 0 * hp:1 * hp])
    z = sig(g[:, 1 * hp:2 * hp])
    n = jnp.tanh(g[:, 2 * hp:3 * hp] + r * g[:, 3 * hp:4 * hp])

    # Hidden is the first hp columns of the fused operand (no separate DMA).
    h = xh_ref[:, :hp].astype(jnp.float32)
    out_ref[...] = (n + z * (h - n)).astype(out_ref.dtype)


def gru_cell(x, hidden, packed_params, *, approx=False):
    """x: (..., I); hidden: (B, H).  packed_params from pack_gru_cell_params."""
    w_all, b_all, hp, ip = packed_params
    x2d = x.reshape(-1, x.shape[-1])
    B, I = x2d.shape
    H = hidden.shape[-1]
    mm = w_all.dtype

    tb, bp = _choose_batch_tile(B)
    K = hp + ip

    # Fused [h | x] operand (single DMA'd input; pad+cast fused in one op).
    xh = jnp.concatenate(
        [_pad2d(hidden, bp, hp, mm), _pad2d(x2d, bp, ip, mm)], axis=1)

    out = pl.pallas_call(
        partial(gru_cell_kernel, approx=approx),
        out_shape=jax.ShapeDtypeStruct((bp, hp), hidden.dtype),
        grid_spec=pltpu.PrefetchScalarGridSpec(
            num_scalar_prefetch=0,
            grid=(bp // tb,),
            in_specs=[
                pl.BlockSpec((tb, K), lambda i: (i, 0)),         # [h | x]
                pl.BlockSpec((K, 4 * hp), lambda i: (0, 0)),     # weights (resident)
                pl.BlockSpec((1, 4 * hp), lambda i: (0, 0)),     # bias
            ],
            out_specs=pl.BlockSpec((tb, hp), lambda i: (i, 0)),
        ),
        compiler_params=pltpu.CompilerParams(
            dimension_semantics=("parallel",)),
    )(xh, w_all, b_all)
    return out[:B, :H]


# ---------------------------------------------------------------------------
# Fused recurrence over a sequence (x projection hoisted out of the loop).
# ---------------------------------------------------------------------------
def pack_gru_seq_params(wx, wh, bx, bh, *, matmul_dtype=None):
    """Pack for the sequence kernel:
      wx3: (Ip, 3hp), wh3: (hp, 3hp),
      bx3: (1, 3hp) with r/z biases pre-summed (bx+bh) and bx_n,
      bhn: (1, hp)  = bh_n (added to the h_n slice before the r* multiply).
    """
    three_h, I = wx.shape
    H = three_h // 3
    hp = _round_up(H, 128)
    ip = _round_up(I, 128)
    mm = matmul_dtype or wx.dtype

    wx3 = jnp.zeros((ip, 3 * hp), jnp.float32)
    wh3 = jnp.zeros((hp, 3 * hp), jnp.float32)
    for g in range(3):
        wx3 = wx3.at[:I, g * hp:g * hp + H].set(wx[g * H:(g + 1) * H].T)
        wh3 = wh3.at[:H, g * hp:g * hp + H].set(wh[g * H:(g + 1) * H].T)

    bx3 = jnp.zeros((1, 3 * hp), jnp.float32)
    bx3 = bx3.at[0, 0:H].set(bx[0:H] + bh[0:H])
    bx3 = bx3.at[0, hp:hp + H].set(bx[H:2 * H] + bh[H:2 * H])
    bx3 = bx3.at[0, 2 * hp:2 * hp + H].set(bx[2 * H:3 * H])
    bhn = jnp.zeros((1, hp), jnp.float32).at[0, 0:H].set(bh[2 * H:3 * H])
    return wx3.astype(mm), wh3.astype(mm), bx3, bhn, hp, ip


def gru_seq_kernel(gx_ref, h0_ref, wh_ref, bhn_ref, out_ref, h_acc, *, approx):
    hp = h_acc.shape[-1]
    tc = gx_ref.shape[0]          # time-chunk length (static)
    tb = gx_ref.shape[1]
    sig = _sigmoid_fast if approx else jax.nn.sigmoid

    @pl.when(pl.program_id(1) == 0)      # first time-chunk of this batch tile
    def _():
        h_acc[...] = h0_ref[...].astype(jnp.float32)

    wh = wh_ref[...]                                   # VMEM-resident Wh
    bhn = jnp.broadcast_to(bhn_ref[...], (tb, hp))     # hoisted broadcast
    h = h_acc[...]

    # Unrolled chunk of the recurrence; only the h-matmul is per-step work.
    for tt in range(tc):
        gx = gx_ref[tt]                                # precomputed x@Wx + b
        gh = jnp.dot(h.astype(wh.dtype), wh,
                     preferred_element_type=jnp.float32)
        r = sig(gx[:, 0 * hp:1 * hp] + gh[:, 0 * hp:1 * hp])
        z = sig(gx[:, 1 * hp:2 * hp] + gh[:, 1 * hp:2 * hp])
        n = jnp.tanh(gx[:, 2 * hp:3 * hp] + r * (gh[:, 2 * hp:3 * hp] + bhn))
        h = n + z * (h - n)
        out_ref[tt] = h.astype(out_ref.dtype)

    h_acc[...] = h                                     # carried hidden (VMEM)


def gru_sequence(x_seq, h0, packed_params, *, approx=False, out_dtype=None):
    """x_seq: (T, B, I); h0: (B, H). Returns all hidden states (T, B, H)."""
    wx3, wh3, bx3, bhn, hp, ip = packed_params
    T, B, I = x_seq.shape
    H = h0.shape[-1]
    mm = wx3.dtype
    out_dtype = out_dtype or h0.dtype

    tb, bp = _choose_batch_tile(B)
    tc = _choose_time_chunk(T, tb, hp)

    # (1) Hoisted input projection: one big matmul (M = T*B) at full MXU
    #     utilisation, done by XLA outside the serial recurrence.
    gx = jnp.dot(x_seq.reshape(T * B, I).astype(mm), wx3[:I],
                 preferred_element_type=jnp.float32) + bx3
    gx = gx.reshape(T, B, 3 * hp)
    if bp != B:
        gx = jnp.pad(gx, ((0, 0), (0, bp - B), (0, 0)))
    h0p = _pad2d(h0, bp, hp, h0.dtype)

    out = pl.pallas_call(
        partial(gru_seq_kernel, approx=approx),
        out_shape=jax.ShapeDtypeStruct((T, bp, hp), out_dtype),
        grid_spec=pltpu.PrefetchScalarGridSpec(
            num_scalar_prefetch=0,
            grid=(bp // tb, T // tc),              # batch outer, time inner
            in_specs=[
                pl.BlockSpec((tc, tb, 3 * hp), lambda b, s: (s, b, 0)),  # gx chunk
                pl.BlockSpec((tb, hp), lambda b, s: (b, 0)),             # h0
                pl.BlockSpec((hp, 3 * hp), lambda b, s: (0, 0)),         # Wh (resident)
                pl.BlockSpec((1, hp), lambda b, s: (0, 0)),              # bh_n
            ],
            out_specs=pl.BlockSpec((tc, tb, hp), lambda b, s: (s, b, 0)),
            scratch_shapes=[pltpu.VMEM((tb, hp), jnp.float32)],          # carried h
        ),
        compiler_params=pltpu.CompilerParams(
            dimension_semantics=("parallel", "arbitrary")),
    )(gx, h0p, wh3, bhn)
    return out[:, :B, :H]


# ---------------------------------------------------------------------------
# Pure-JAX references (match the PyTorch module exactly).
# ---------------------------------------------------------------------------
def gru_cell_ref(x, hidden, wx, wh, bx, bh):
    x = x.reshape(-1, x.shape[-1])
    gate_x = x @ wx.T + bx
    gate_h = hidden @ wh.T + bh
    i_r, i_i, i_n = jnp.split(gate_x, 3, axis=1)
    h_r, h_i, h_n = jnp.split(gate_h, 3, axis=1)
    r = jax.nn.sigmoid(i_r + h_r)
    z = jax.nn.sigmoid(i_i + h_i)
    n = jnp.tanh(i_n + r * h_n)
    return n + z * (hidden - n)


def gru_seq_ref(x_seq, h0, wx, wh, bx, bh):
    hs, h = [], h0
    for t in range(x_seq.shape[0]):
        h = gru_cell_ref(x_seq[t], h, wx, wh, bx, bh)
        hs.append(h)
    return jnp.stack(hs, 0)


if __name__ == "__main__":
    input_size, hidden_size, batch, seq = 16, 32, 8, 8

    key = jax.random.PRNGKey(0)
    kx, kxs, kh, kwx, kwh, kbx, kbh = jax.random.split(key, 7)

    # reset_parameters(): uniform(-std, std), std = 1/sqrt(hidden_size).
    std = 1.0 / (hidden_size ** 0.5)
    wx = jax.random.uniform(kwx, (3 * hidden_size, input_size),
                            jnp.float32, -std, std)
    wh = jax.random.uniform(kwh, (3 * hidden_size, hidden_size),
                            jnp.float32, -std, std)
    bx = jax.random.uniform(kbx, (3 * hidden_size,), jnp.float32, -std, std)
    bh = jax.random.uniform(kbh, (3 * hidden_size,), jnp.float32, -std, std)

    x = jax.random.normal(kx, (batch, input_size), jnp.float32)
    h0 = jax.random.normal(kh, (batch, hidden_size), jnp.float32)
    x_seq = jax.random.normal(kxs, (seq, batch, input_size), jnp.float32)

    # --- single-step cell, exact path (f32 MXU, exact sigmoid/tanh) ----------
    ref = gru_cell_ref(x, h0, wx, wh, bx, bh)
    params_f32 = pack_gru_cell_params(wx, wh, bx, bh)
    out = jax.block_until_ready(gru_cell(x, h0, params_f32, approx=False))
    assert out.shape == (batch, hidden_size)
    assert jnp.allclose(out, ref, atol=1e-5, rtol=1e-4), "exact cell mismatch"

    # --- single-step cell, fast path (bf16 MXU operands + approx sigmoid) ----
    params_bf16 = pack_gru_cell_params(wx, wh, bx, bh,
                                       matmul_dtype=jnp.bfloat16)
    out_fast = jax.block_until_ready(gru_cell(x, h0, params_bf16, approx=True))
    assert jnp.allclose(out_fast, ref, atol=3e-2, rtol=3e-2), "fast cell mismatch"

    # --- fused recurrence: hoisted x-projection + chunked time loop ----------
    seq_ref = gru_seq_ref(x_seq, h0, wx, wh, bx, bh)
    seq_params = pack_gru_seq_params(wx, wh, bx, bh)
    seq_out = jax.block_until_ready(
        gru_sequence(x_seq, h0, seq_params, approx=False))
    assert seq_out.shape == (seq, batch, hidden_size)
    assert jnp.allclose(seq_out, seq_ref, atol=1e-4, rtol=1e-4), "seq mismatch"

    print("KERNEL_OK")
</pallas_src>

<mosaic_0001>
module attributes {stable_mosaic.version = 11 : i64} {
  func.func @gru_cell_kernel(%arg0: i32, %arg1: memref<8x256xf32, #tpu.memory_space<vmem>>, %arg2: memref<256x512xf32, #tpu.memory_space<vmem>>, %arg3: memref<1x512xf32, #tpu.memory_space<vmem>>, %arg4: memref<8x128xf32, #tpu.memory_space<vmem>>) attributes {dimension_semantics = [#tpu.dimension_semantics<parallel>], iteration_bounds = array<i64: 1>, scalar_prefetch = 0 : i64, scratch_operands = 0 : i64, tpu.core_type = #tpu.core_type<tc>, window_params = [{transform_indices = @transform_0, window_bounds = array<i64: 8, 256>}, {pipeline_mode = #tpu.pipeline_mode<synchronous>, transform_indices = @transform_1, window_bounds = array<i64: 256, 512>}, {pipeline_mode = #tpu.pipeline_mode<synchronous>, transform_indices = @transform_2, window_bounds = array<i64: 1, 512>}, {transform_indices = @transform_3, window_bounds = array<i64: 8, 128>}]} {
    %c0 = arith.constant 0 : index
    %c0_0 = arith.constant 0 : index
    %0 = vector.load %arg1[%c0, %c0_0] : memref<8x256xf32, #tpu.memory_space<vmem>>, vector<8x256xf32>
    %c0_1 = arith.constant 0 : index
    %c0_2 = arith.constant 0 : index
    %1 = vector.load %arg2[%c0_1, %c0_2] : memref<256x512xf32, #tpu.memory_space<vmem>>, vector<256x512xf32>
    %cst = arith.constant dense<0.000000e+00> : vector<8x512xf32>
    %2 = tpu.matmul %0, %1, %cst {dimension_numbers = #tpu.dot_dimension_numbers<[1], [0], [0], [1], [0, 0, 1, 1], [], []>} : vector<8x256xf32>, vector<256x512xf32>, vector<8x512xf32> -> vector<8x512xf32>
    %c0_3 = arith.constant 0 : index
    %c0_4 = arith.constant 0 : index
    %3 = vector.load %arg3[%c0_3, %c0_4] : memref<1x512xf32, #tpu.memory_space<vmem>>, vector<1x512xf32>
    %4 = vector.broadcast %3 : vector<1x512xf32> to vector<8x512xf32>
    %5 = arith.addf %2, %4 : vector<8x512xf32>
    %6 = vector.extract_strided_slice %5 {offsets = [0, 0], sizes = [8, 128], strides = [1, 1]} : vector<8x512xf32> to vector<8x128xf32>
    %7 = arith.negf %6 : vector<8x128xf32>
    %8 = math.exp %7 : vector<8x128xf32>
    %cst_5 = arith.constant 1.000000e+00 : f32
    %9 = vector.broadcast %cst_5 : f32 to vector<8x128xf32>
    %10 = arith.addf %9, %8 : vector<8x128xf32>
    %11 = arith.divf %9, %10 : vector<8x128xf32>
    %12 = vector.extract_strided_slice %5 {offsets = [0, 128], sizes = [8, 128], strides = [1, 1]} : vector<8x512xf32> to vector<8x128xf32>
    %13 = arith.negf %12 : vector<8x128xf32>
    %14 = math.exp %13 : vector<8x128xf32>
    %cst_6 = arith.constant 1.000000e+00 : f32
    %15 = vector.broadcast %cst_6 : f32 to vector<8x128xf32>
    %16 = arith.addf %15, %14 : vector<8x128xf32>
    %17 = arith.divf %15, %16 : vector<8x128xf32>
    %18 = vector.extract_strided_slice %5 {offsets = [0, 256], sizes = [8, 128], strides = [1, 1]} : vector<8x512xf32> to vector<8x128xf32>
    %19 = vector.extract_strided_slice %5 {offsets = [0, 384], sizes = [8, 128], strides = [1, 1]} : vector<8x512xf32> to vector<8x128xf32>
    %20 = arith.mulf %11, %19 : vector<8x128xf32>
    %21 = arith.addf %18, %20 : vector<8x128xf32>
    %22 = math.tanh %21 : vector<8x128xf32>
    %c0_7 = arith.constant 0 : index
    %c0_8 = arith.constant 0 : index
    %23 = vector.load %arg1[%c0_7, %c0_8] : memref<8x256xf32, #tpu.memory_space<vmem>>, vector<8x128xf32>
    %24 = arith.subf %23, %22 : vector<8x128xf32>
    %25 = arith.mulf %17, %24 : vector<8x128xf32>
    %26 = arith.addf %22, %25 : vector<8x128xf32>
    %c0_9 = arith.constant 0 : index
    %c0_10 = arith.constant 0 : index
    %27 = vector.load %arg4[%c0_9, %c0_10] : memref<8x128xf32, #tpu.memory_space<vmem>>, vector<8x128xf32>
    tpu.vector_store %arg4[%c0_9, %c0_10], %26 {strides = array<i32>} : memref<8x128xf32, #tpu.memory_space<vmem>>, vector<8x128xf32>,
    return
  }
  func.func @transform_0(%arg0: i32) -> (i32, i32) {
    %c0_i32 = arith.constant 0 : i32
    %c0_i32_0 = arith.constant 0 : i32
    return %arg0, %c0_i32 : i32, i32
  }
  func.func @transform_1(%arg0: i32) -> (i32, i32) {
    %c0_i32 = arith.constant 0 : i32
    %c0_i32_0 = arith.constant 0 : i32
    %c0_i32_1 = arith.constant 0 : i32
    return %c0_i32, %c0_i32_0 : i32, i32
  }
  func.func @transform_2(%arg0: i32) -> (i32, i32) {
    %c0_i32 = arith.constant 0 : i32
    %c0_i32_0 = arith.constant 0 : i32
    %c0_i32_1 = arith.constant 0 : i32
    return %c0_i32, %c0_i32_0 : i32, i32
  }
  func.func @transform_3(%arg0: i32) -> (i32, i32) {
    %c0_i32 = arith.constant 0 : i32
    %c0_i32_0 = arith.constant 0 : i32
    return %arg0, %c0_i32 : i32, i32
  }
}

</mosaic_0001>

<llo_original>
// kernel: tpu_custom_call.1
$region0: #{tpu_custom_call.1}
  #allocation0 [shape = 'u32[]', space=smem, size = 0x4, offset = 0x4, fixed_abs, tag = 'smem constant byte address 0x4 - core index']
  #allocation1 [shape = 'u32[144,128]{1,0:T(1,128)}', space=vmem, size = 0x12000, scoped, tag = 'internal scratch']
  %s0 = inlined_call_operand.hbm [shape: f32[8,256], index: 0, kind: input, shape index: {}]
  %s1 = inlined_call_operand.hbm [shape: f32[256,512], index: 1, kind: input, shape index: {}]
  %s2 = inlined_call_operand.vmem [shape: f32[1,512], index: 2, kind: input, shape index: {}]
  %s3 = inlined_call_operand.hbm [shape: f32[8,128], index: 3, kind: output, shape index: {}]
  %s4 = sld [smem:[#allocation0]]
  $region30: #{tpu_custom_call.1} parent=0
    _
  %s6 = ssub.s32 1, %s4
  %s7 = scalar_select 0, %s6, %s4
  $region1: #{tpu_custom_call.1} parent=0
    #allocation2 [shape = 'u8[8192]{0}', space=vmem, size = 0x2000, scoped, tag = 'input window, operand 0, single buffered']
    #allocation3 [shape = 's32[1]{0}', space=sflag, size = 0x4, scoped, tag = 'scoped memory for tpu_custom_call.1']
    #allocation4 [shape = 's32[1]{0}', space=sflag, size = 0x4, scoped, tag = 'scoped memory for tpu_custom_call.1']
    #allocation5 [shape = 'u8[524288]{0}', space=vmem, size = 0x80000, scoped, tag = 'input window, operand 1, single buffered']
    #allocation6 [shape = 's32[1]{0}', space=sflag, size = 0x4, scoped, tag = 'scoped memory for tpu_custom_call.1']
    #allocation7 [shape = 'u8[4096]{0}', space=vmem, size = 0x1000, scoped, tag = 'output window, operand 0, single buffered']
    %8 = vsyncpa [#allocation3], 0
    %9 = vsyncpa [#allocation6], 0
    %10 = vsyncpa [#allocation4], 0
    // Predicated region
    $region2: #{tpu_custom_call.1} parent=1 // pred_check
      _
    $region3: #{tpu_custom_call.1} parent=1 // pred_check_branch
      %12 = sbr.rel (0) target = $region5
    $region4: #{tpu_custom_call.1} parent=1 // pred_region
      %s14 = ssub.s32 256, 256
      %15 = vsyncadd [#allocation3], %s14
      %s17 = sshll.u32 [#allocation2], 4
      %s18 = int_to_ptr.vmem [resolvable:$true] %s17
      %20 = dma.hbm_to_vmem [thread:$0]  %s0, 256, %s18, [#allocation3]
    $region5: #{tpu_custom_call.1} parent=1 // pred_fallthru
      _
    // Predicated region
    $region6: #{tpu_custom_call.1} parent=1 // pred_check
      _
    $region7: #{tpu_custom_call.1} parent=1 // pred_check_branch
      %22 = sbr.rel (0) target = $region9
    $region8: #{tpu_custom_call.1} parent=1 // pred_region
      %s24 = ssub.s32 16384, 16384
      %25 = vsyncadd [#allocation6], %s24
      %s26 = sshll.u32 [#allocation5], 4
      %s27 = int_to_ptr.vmem [resolvable:$true] %s26
      %32 = dma.hbm_to_vmem [thread:$0]  %s1, 16384, %s27, [#allocation6], 512, 512, 32
    $region9: #{tpu_custom_call.1} parent=1 // pred_fallthru
      _
    // Predicated region
    $region10: #{tpu_custom_call.1} parent=1 // pred_check
      _
    $region11: #{tpu_custom_call.1} parent=1 // pred_check_branch
      %34 = sbr.rel (0) target = $region13
    $region12: #{tpu_custom_call.1} parent=1 // pred_region
      _
    $region13: #{tpu_custom_call.1} parent=1 // pred_fallthru
      _
    // Predicated region
    $region14: #{tpu_custom_call.1} parent=1 // pred_check
      _
    $region15: #{tpu_custom_call.1} parent=1 // pred_check_branch
      %36 = sbr.rel (0) target = $region17
    $region16: #{tpu_custom_call.1} parent=1 // pred_region
      %37 = dma.done [#allocation3], 256
    $region17: #{tpu_custom_call.1} parent=1 // pred_fallthru
      _
    // Predicated region
    $region18: #{tpu_custom_call.1} parent=1 // pred_check
      _
    $region19: #{tpu_custom_call.1} parent=1 // pred_check_branch
      %39 = sbr.rel (0) target = $region21
    $region20: #{tpu_custom_call.1} parent=1 // pred_region
      %40 = dma.done [#allocation6], 16384
    $region21: #{tpu_custom_call.1} parent=1 // pred_fallthru
      _
    %v41 = vld [vmem:[#allocation2] sm:$0xff]
    %v42 = vld [vmem:[#allocation2 + $0x8] sm:$0xff]
    %v43 = vld [vmem:[#allocation5] sm:$0xff]
    %v44 = vld [vmem:[#allocation5 + $0x8] sm:$0xff]
    %v45 = vld [vmem:[#allocation5 + $0x10] sm:$0xff]
    %v46 = vld [vmem:[#allocation5 + $0x18] sm:$0xff]
    %v47 = vld [vmem:[#allocation5 + $0x20] sm:$0xff]
    %v48 = vld [vmem:[#allocation5 + $0x28] sm:$0xff]
    %v49 = vld [vmem:[#allocation5 + $0x30] sm:$0xff]
    %v50 = vld [vmem:[#allocation5 + $0x38] sm:$0xff]
    %v51 = vld [vmem:[#allocation5 + $0x40] sm:$0xff]
    %v52 = vld [vmem:[#allocation5 + $0x48] sm:$0xff]
    %v53 = vld [vmem:[#allocation5 + $0x50] sm:$0xff]
    %v54 = vld [vmem:[#allocation5 + $0x58] sm:$0xff]
    %v55 = vld [vmem:[#allocation5 + $0x60] sm:$0xff]
    %v56 = vld [vmem:[#allocation5 + $0x68] sm:$0xff]
    %v57 = vld [vmem:[#allocation5 + $0x70] sm:$0xff]
    %v58 = vld [vmem:[#allocation5 + $0x78] sm:$0xff]
    %v59 = vld [vmem:[#allocation5 + $0x80] sm:$0xff]
    %v60 = vld [vmem:[#allocation5 + $0x88] sm:$0xff]
    %v61 = vld [vmem:[#allocation5 + $0x90] sm:$0xff]
    %v62 = vld [vmem:[#allocation5 + $0x98] sm:$0xff]
    %v63 = vld [vmem:[#allocation5 + $0xa0] sm:$0xff]
    %v64 = vld [vmem:[#allocation5 + $0xa8] sm:$0xff]
    %v65 = vld [vmem:[#allocation5 + $0xb0] sm:$0xff]
    %v66 = vld [vmem:[#allocation5 + $0xb8] sm:$0xff]
    %v67 = vld [vmem:[#allocation5 + $0xc0] sm:$0xff]
    %v68 = vld [vmem:[#allocation5 + $0xc8] sm:$0xff]
    %v69 = vld [vmem:[#allocation5 + $0xd0] sm:$0xff]
    %v70 = vld [vmem:[#allocation5 + $0xd8] sm:$0xff]
    %v71 = vld [vmem:[#allocation5 + $0xe0] sm:$0xff]
    %v72 = vld [vmem:[#allocation5 + $0xe8] sm:$0xff]
    %v73 = vld [vmem:[#allocation5 + $0xf0] sm:$0xff]
    %v74 = vld [vmem:[#allocation5 + $0xf8] sm:$0xff]
    %v75 = vld [vmem:[#allocation5 + $0x100] sm:$0xff]
    %v76 = vld [vmem:[#allocation5 + $0x108] sm:$0xff]
    %v77 = vld [vmem:[#allocation5 + $0x110] sm:$0xff]
    %v78 = vld [vmem:[#allocation5 + $0x118] sm:$0xff]
    %v79 = vld [vmem:[#allocation5 + $0x120] sm:$0xff]
    %v80 = vld [vmem:[#allocation5 + $0x128] sm:$0xff]
    %v81 = vld [vmem:[#allocation5 + $0x130] sm:$0xff]
    %v82 = vld [vmem:[#allocation5 + $0x138] sm:$0xff]
    %v83 = vld [vmem:[#allocation5 + $0x140] sm:$0xff]
    %v84 = vld [vmem:[#allocation5 + $0x148] sm:$0xff]
    %v85 = vld [vmem:[#allocation5 + $0x150] sm:$0xff]
    %v86 = vld [vmem:[#allocation5 + $0x158] sm:$0xff]
    %v87 = vld [vmem:[#allocation5 + $0x160] sm:$0xff]
    %v88 = vld [vmem:[#allocation5 + $0x168] sm:$0xff]
    %v89 = vld [vmem:[#allocation5 + $0x170] sm:$0xff]
    %v90 = vld [vmem:[#allocation5 + $0x178] sm:$0xff]
    %v91 = vld [vmem:[#allocation5 + $0x180] sm:$0xff]
    %v92 = vld [vmem:[#allocation5 + $0x188] sm:$0xff]
    %v93 = vld [vmem:[#allocation5 + $0x190] sm:$0xff]
    %v94 = vld [vmem:[#allocation5 + $0x198] sm:$0xff]
    %v95 = vld [vmem:[#allocation5 + $0x1a0] sm:$0xff]
    %v96 = vld [vmem:[#allocation5 + $0x1a8] sm:$0xff]
    %v97 = vld [vmem:[#allocation5 + $0x1b0] sm:$0xff]
    %v98 = vld [vmem:[#allocation5 + $0x1b8] sm:$0xff]
    %v99 = vld [vmem:[#allocation5 + $0x1c0] sm:$0xff]
    %v100 = vld [vmem:[#allocation5 + $0x1c8] sm:$0xff]
    %v101 = vld [vmem:[#allocation5 + $0x1d0] sm:$0xff]
    %v102 = vld [vmem:[#allocation5 + $0x1d8] sm:$0xff]
    %v103 = vld [vmem:[#allocation5 + $0x1e0] sm:$0xff]
    %v104 = vld [vmem:[#allocation5 + $0x1e8] sm:$0xff]
    %v105 = vld [vmem:[#allocation5 + $0x1f0] sm:$0xff]
    %v106 = vld [vmem:[#allocation5 + $0x1f8] sm:$0xff]
    %v107 = vld [vmem:[#allocation5 + $0x200] sm:$0xff]
    %v108 = vld [vmem:[#allocation5 + $0x208] sm:$0xff]
    %v109 = vld [vmem:[#allocation5 + $0x210] sm:$0xff]
    %v110 = vld [vmem:[#allocation5 + $0x218] sm:$0xff]
    %v111 = vld [vmem:[#allocation5 + $0x220] sm:$0xff]
    %v112 = vld [vmem:[#allocation5 + $0x228] sm:$0xff]
    %v113 = vld [vmem:[#allocation5 + $0x230] sm:$0xff]
    %v114 = vld [vmem:[#allocation5 + $0x238] sm:$0xff]
    %v115 = vld [vmem:[#allocation5 + $0x240] sm:$0xff]
    %v116 = vld [vmem:[#allocation5 + $0x248] sm:$0xff]
    %v117 = vld [vmem:[#allocation5 + $0x250] sm:$0xff]
    %v118 = vld [vmem:[#allocation5 + $0x258] sm:$0xff]
    %v119 = vld [vmem:[#allocation5 + $0x260] sm:$0xff]
    %v120 = vld [vmem:[#allocation5 + $0x268] sm:$0xff]
    %v121 = vld [vmem:[#allocation5 + $0x270] sm:$0xff]
    %v122 = vld [vmem:[#allocation5 + $0x278] sm:$0xff]
    %v123 = vld [vmem:[#allocation5 + $0x280] sm:$0xff]
    %v124 = vld [vmem:[#allocation5 + $0x288] sm:$0xff]
    %v125 = vld [vmem:[#allocation5 + $0x290] sm:$0xff]
    %v126 = vld [vmem:[#allocation5 + $0x298] sm:$0xff]
    %v127 = vld [vmem:[#allocation5 + $0x2a0] sm:$0xff]
    %v128 = vld [vmem:[#allocation5 + $0x2a8] sm:$0xff]
    %v129 = vld [vmem:[#allocation5 + $0x2b0] sm:$0xff]
    %v130 = vld [vmem:[#allocation5 + $0x2b8] sm:$0xff]
    %v131 = vld [vmem:[#allocation5 + $0x2c0] sm:$0xff]
    %v132 = vld [vmem:[#allocation5 + $0x2c8] sm:$0xff]
    %v133 = vld [vmem:[#allocation5 + $0x2d0] sm:$0xff]
    %v134 = vld [vmem:[#allocation5 + $0x2d8] sm:$0xff]
    %v135 = vld [vmem:[#allocation5 + $0x2e0] sm:$0xff]
    %v136 = vld [vmem:[#allocation5 + $0x2e8] sm:$0xff]
    %v137 = vld [vmem:[#allocation5 + $0x2f0] sm:$0xff]
    %v138 = vld [vmem:[#allocation5 + $0x2f8] sm:$0xff]
    %v139 = vld [vmem:[#allocation5 + $0x300] sm:$0xff]
    %v140 = vld [vmem:[#allocation5 + $0x308] sm:$0xff]
    %v141 = vld [vmem:[#allocation5 + $0x310] sm:$0xff]
    %v142 = vld [vmem:[#allocation5 + $0x318] sm:$0xff]
    %v143 = vld [vmem:[#allocation5 + $0x320] sm:$0xff]
    %v144 = vld [vmem:[#allocation5 + $0x328] sm:$0xff]
    %v145 = vld [vmem:[#allocation5 + $0x330] sm:$0xff]
    %v146 = vld [vmem:[#allocation5 + $0x338] sm:$0xff]
    %v147 = vld [vmem:[#allocation5 + $0x340] sm:$0xff]
    %v148 = vld [vmem:[#allocation5 + $0x348] sm:$0xff]
    %v149 = vld [vmem:[#allocation5 + $0x350] sm:$0xff]
    %v150 = vld [vmem:[#allocation5 + $0x358] sm:$0xff]
    %v151 = vld [vmem:[#allocation5 + $0x360] sm:$0xff]
    %v152 = vld [vmem:[#allocation5 + $0x368] sm:$0xff]
    %v153 = vld [vmem:[#allocation5 + $0x370] sm:$0xff]
    %v154 = vld [vmem:[#allocation5 + $0x378] sm:$0xff]
    %v155 = vld [vmem:[#allocation5 + $0x380] sm:$0xff]
    %v156 = vld [vmem:[#allocation5 + $0x388] sm:$0xff]
    %v157 = vld [vmem:[#allocation5 + $0x390] sm:$0xff]
    %v158 = vld [vmem:[#allocation5 + $0x398] sm:$0xff]
    %v159 = vld [vmem:[#allocation5 + $0x3a0] sm:$0xff]
    %v160 = vld [vmem:[#allocation5 + $0x3a8] sm:$0xff]
    %v161 = vld [vmem:[#allocation5 + $0x3b0] sm:$0xff]
    %v162 = vld [vmem:[#allocation5 + $0x3b8] sm:$0xff]
    %v163 = vld [vmem:[#allocation5 + $0x3c0] sm:$0xff]
    %v164 = vld [vmem:[#allocation5 + $0x3c8] sm:$0xff]
    %v165 = vld [vmem:[#allocation5 + $0x3d0] sm:$0xff]
    %v166 = vld [vmem:[#allocation5 + $0x3d8] sm:$0xff]
    %v167 = vld [vmem:[#allocation5 + $0x3e0] sm:$0xff]
    %v168 = vld [vmem:[#allocation5 + $0x3e8] sm:$0xff]
    %v169 = vld [vmem:[#allocation5 + $0x3f0] sm:$0xff]
    %v170 = vld [vmem:[#allocation5 + $0x3f8] sm:$0xff]
    %v171 = vld [vmem:[%s2] sm:$0xf]
    %v173 = vlaneseq
    %v174 = vshrl.u32 %v173, 7
    %v175 = vsub.s32 0, %v174
    %v176 = vrot.slane %v171, %v175
    %v177 = vlaneseq
    %v178 = vshrl.u32 %v177, 7
    %v179 = vsub.s32 1, %v178
    %v180 = vrot.slane %v171, %v179
    %v181 = vlaneseq
    %v182 = vshrl.u32 %v181, 7
    %v183 = vsub.s32 2, %v182
    %v184 = vrot.slane %v171, %v183
    %v185 = vlaneseq
    %v186 = vshrl.u32 %v185, 7
    %v187 = vsub.s32 3, %v186
    %v188 = vrot.slane %v171, %v187
    %193 = vmatprep.subr.mxu0 %v44
    %194 = vmatpush1.msra.mxu0 %v43
    %195 = vmatprep.subr.mxu0 %v48
    %196 = vmatpush1.msra.mxu0 %v47
    %197 = vmatprep.subr.mxu0 %v52
    %198 = vmatpush1.msra.mxu0 %v51
    %199 = vmatprep.subr.mxu0 %v56
    %200 = vmatpush1.msra.mxu0 %v55
    %201 = vmatprep.subr.mxu0 %v60
    %202 = vmatpush1.msra.mxu0 %v59
    %203 = vmatprep.subr.mxu0 %v64
    %204 = vmatpush1.msra.mxu0 %v63
    %205 = vmatprep.subr.mxu0 %v68
    %206 = vmatpush1.msra.mxu0 %v67
    %207 = vmatprep.subr.mxu0 %v72
    %208 = vmatpush1.msra.mxu0 %v71
    %209 = vmatprep.subr.mxu0 %v76
    %210 = vmatpush1.msra.mxu0 %v75
    %211 = vmatprep.subr.mxu0 %v80
    %212 = vmatpush1.msra.mxu0 %v79
    %213 = vmatprep.subr.mxu0 %v84
    %214 = vmatpush1.msra.mxu0 %v83
    %215 = vmatprep.subr.mxu0 %v88
    %216 = vmatpush1.msra.mxu0 %v87
    %217 = vmatprep.subr.mxu0 %v92
    %218 = vmatpush1.msra.mxu0 %v91
    %219 = vmatprep.subr.mxu0 %v96
    %220 = vmatpush1.msra.mxu0 %v95
    %221 = vmatprep.subr.mxu0 %v100
    %222 = vmatpush1.msra.mxu0 %v99
    %223 = vmatprep.subr.mxu0 %v104
    %224 = vmatpush1.msra.mxu0 %v103
    %225 = vmatprep.subr.mxu0 %v108
    %226 = vmatpush1.msra.mxu0 %v107
    %227 = vmatprep.subr.mxu0 %v112
    %228 = vmatpush1.msra.mxu0 %v111
    %229 = vmatprep.subr.mxu0 %v116
    %230 = vmatpush1.msra.mxu0 %v115
    %231 = vmatprep.subr.mxu0 %v120
    %232 = vmatpush1.msra.mxu0 %v119
    %233 = vmatprep.subr.mxu0 %v124
    %234 = vmatpush1.msra.mxu0 %v123
    %235 = vmatprep.subr.mxu0 %v128
    %236 = vmatpush1.msra.mxu0 %v127
    %237 = vmatprep.subr.mxu0 %v132
    %238 = vmatpush1.msra.mxu0 %v131
    %239 = vmatprep.subr.mxu0 %v136
    %240 = vmatpush1.msra.mxu0 %v135
    %241 = vmatprep.subr.mxu0 %v140
    %242 = vmatpush1.msra.mxu0 %v139
    %243 = vmatprep.subr.mxu0 %v144
    %244 = vmatpush1.msra.mxu0 %v143
    %245 = vmatprep.subr.mxu0 %v148
    %246 = vmatpush1.msra.mxu0 %v147
    %247 = vmatprep.subr.mxu0 %v152
    %248 = vmatpush1.msra.mxu0 %v151
    %249 = vmatprep.subr.mxu0 %v156
    %250 = vmatpush1.msra.mxu0 %v155
    %251 = vmatprep.subr.mxu0 %v160
    %252 = vmatpush1.msra.mxu0 %v159
    %253 = vmatprep.subr.mxu0 %v164
    %254 = vmatpush1.msra.mxu0 %v163
    %255 = vmatprep.subr.mxu0 %v168
    %256 = vmatpush1.msra.mxu0 %v167
    %257 = vmatprep.mubr.f32.mxu0 %v42
    %258 = vmatmul.mubr.f32.gmra.mrb[0].mxu0 %v41
    %v259 = vpop.f32.mrb[0].mxu0
    %v260 = vadd.f32 %v176, %v259
    %v261 = vpop.f32.mrb[0].mxu0
    %v262 = vadd.f32 %v180, %v261
    %263 = vdwg.mxu0
    %264 = vmatprep.subr.mxu0 %v46
    %265 = vmatpush1.msra.mxu0 %v45
    %266 = vmatprep.subr.mxu0 %v50
    %267 = vmatpush1.msra.mxu0 %v49
    %268 = vmatprep.subr.mxu0 %v54
    %269 = vmatpush1.msra.mxu0 %v53
    %270 = vmatprep.subr.mxu0 %v58
    %271 = vmatpush1.msra.mxu0 %v57
    %272 = vmatprep.subr.mxu0 %v62
    %273 = vmatpush1.msra.mxu0 %v61
    %274 = vmatprep.subr.mxu0 %v66
    %275 = vmatpush1.msra.mxu0 %v65
    %276 = vmatprep.subr.mxu0 %v70
    %277 = vmatpush1.msra.mxu0 %v69
    %278 = vmatprep.subr.mxu0 %v74
    %279 = vmatpush1.msra.mxu0 %v73
    %280 = vmatprep.subr.mxu0 %v78
    %281 = vmatpush1.msra.mxu0 %v77
    %282 = vmatprep.subr.mxu0 %v82
    %283 = vmatpush1.msra.mxu0 %v81
    %284 = vmatprep.subr.mxu0 %v86
    %285 = vmatpush1.msra.mxu0 %v85
    %286 = vmatprep.subr.mxu0 %v90
    %287 = vmatpush1.msra.mxu0 %v89
    %288 = vmatprep.subr.mxu0 %v94
    %289 = vmatpush1.msra.mxu0 %v93
    %290 = vmatprep.subr.mxu0 %v98
    %291 = vmatpush1.msra.mxu0 %v97
    %292 = vmatprep.subr.mxu0 %v102
    %293 = vmatpush1.msra.mxu0 %v101
    %294 = vmatprep.subr.mxu0 %v106
    %295 = vmatpush1.msra.mxu0 %v105
    %296 = vmatprep.subr.mxu0 %v110
    %297 = vmatpush1.msra.mxu0 %v109
    %298 = vmatprep.subr.mxu0 %v114
    %299 = vmatpush1.msra.mxu0 %v113
    %300 = vmatprep.subr.mxu0 %v118
    %301 = vmatpush1.msra.mxu0 %v117
    %302 = vmatprep.subr.mxu0 %v122
    %303 = vmatpush1.msra.mxu0 %v121
    %304 = vmatprep.subr.mxu0 %v126
    %305 = vmatpush1.msra.mxu0 %v125
    %306 = vmatprep.subr.mxu0 %v130
    %307 = vmatpush1.msra.mxu0 %v129
    %308 = vmatprep.subr.mxu0 %v134
    %309 = vmatpush1.msra.mxu0 %v133
    %310 = vmatprep.subr.mxu0 %v138
    %311 = vmatpush1.msra.mxu0 %v137
    %312 = vmatprep.subr.mxu0 %v142
    %313 = vmatpush1.msra.mxu0 %v141
    %314 = vmatprep.subr.mxu0 %v146
    %315 = vmatpush1.msra.mxu0 %v145
    %316 = vmatprep.subr.mxu0 %v150
    %317 = vmatpush1.msra.mxu0 %v149
    %318 = vmatprep.subr.mxu0 %v154
    %319 = vmatpush1.msra.mxu0 %v153
    %320 = vmatprep.subr.mxu0 %v158
    %321 = vmatpush1.msra.mxu0 %v157
    %322 = vmatprep.subr.mxu0 %v162
    %323 = vmatpush1.msra.mxu0 %v161
    %324 = vmatprep.subr.mxu0 %v166
    %325 = vmatpush1.msra.mxu0 %v165
    %326 = vmatprep.subr.mxu0 %v170
    %327 = vmatpush1.msra.mxu0 %v169
    %328 = vmatprep.mubr.f32.mxu0 %v42
    %329 = vmatmul.mubr.f32.gmra.mrb[0].mxu0 %v41
    %v330 = vpop.f32.mrb[0].mxu0
    %v331 = vadd.f32 %v184, %v330
    %v332 = vpop.f32.mrb[0].mxu0
    %v333 = vadd.f32 %v188, %v332
    %334 = vdwg.mxu0
    %v335 = vxor.u32 %v260, 2147483648
    %v336 = vmul.f32 %v335, 1.442695
    %v337 = vpow.pop %v336
    %v338 = vadd.f32 %v337, 1.0
    %v339 = vrcp.pop %v338
    %v340 = vmul.f32 1.0, %v339
    %v341 = vxor.u32 %v262, 2147483648
    %v342 = vmul.f32 %v341, 1.442695
    %v343 = vpow.pop %v342
    %v344 = vadd.f32 %v343, 1.0
    %v345 = vrcp.pop %v344
    %v346 = vmul.f32 1.0, %v345
    %v347 = vmul.f32 %v340, %v333
    %v348 = vadd.f32 %v331, %v347
    %v349 = vtanh.pop %v348
    %v350 = vld [vmem:[#allocation2] sm:$0xff]
    %v351 = vsub.f32 %v350, %v349
    %v352 = vmul.f32 %v346, %v351
    %v353 = vadd.f32 %v349, %v352
    %354 = vst [vmem:[#allocation7] sm:$0xff] %v353
    // Predicated region
    $region22: #{tpu_custom_call.1} parent=1 // pred_check
      _
    $region23: #{tpu_custom_call.1} parent=1 // pred_check_branch
      %356 = sbr.rel (0) target = $region25
    $region24: #{tpu_custom_call.1} parent=1 // pred_region
      %s358 = ssub.s32 128, 128
      %359 = vsyncadd [#allocation4], %s358
      %s361 = sshll.u32 [#allocation7], 4
      %s362 = int_to_ptr.vmem [resolvable:$true] %s361
      %364 = dma.vmem_to_hbm [thread:$0]  %s362, 128, %s3, [#allocation4]
    $region25: #{tpu_custom_call.1} parent=1 // pred_fallthru
      _
    // Predicated region
    $region26: #{tpu_custom_call.1} parent=1 // pred_check
      _
    $region27: #{tpu_custom_call.1} parent=1 // pred_check_branch
      %366 = sbr.rel (0) target = $region29
    $region28: #{tpu_custom_call.1} parent=1 // pred_region
      %367 = dma.done [#allocation4], 128
    $region29: #{tpu_custom_call.1} parent=1 // pred_fallthru
      _
    %368 = vsyncpa [#allocation3], 1
    %369 = vsyncpa [#allocation6], 1
    %370 = vsyncpa [#allocation4], 1

</llo_original>
